<compile_context>
chip_gen: v5e
topology: v5e:2x2
jax: 0.10.0
libtpu: 0.0.40
codegen_flags: <defaults>
</compile_context>

<pallas_src>
import functools

import jax
import jax.numpy as jnp
from jax.experimental import pallas as pl
from jax.experimental.pallas import tpu as pltpu


def _round_up(x, m):
    return (x + m - 1) // m * m


# --------------------------------------------------------------------------------------
# Kernel
# --------------------------------------------------------------------------------------
def _mdn_fused_kernel(x_ref, w_ref, b_ref, out_ref, *, std_start):
    """One batch tile of the fused MDN head.

    y = x @ [W_pi | W_mu | pad | W_std | pad] + b   (single MXU matmul, f32 accumulation)
    exp() is applied only to the std head, which starts at the 128-lane boundary
    `std_start`; both stores are lane-dense static slices.
    """
    y = jnp.dot(x_ref[...], w_ref[...], preferred_element_type=jnp.float32)  # [TM, Npad] f32
    y = y + b_ref[...]                                                       # bias add in f32
    out_ref[:, :std_start] = y[:, :std_start].astype(out_ref.dtype)
    out_ref[:, std_start:] = jnp.exp(y[:, std_start:]).astype(out_ref.dtype)


# --------------------------------------------------------------------------------------
# Tiling / VMEM heuristics
# --------------------------------------------------------------------------------------
def _vmem_budget():
    """(tile budget, vmem_limit_bytes) sized per TPU generation (conservative fallback)."""
    try:
        info = pltpu.get_tpu_info()
        cap = int(getattr(info, "vmem_capacity_bytes", 0)) or 64 * 1024 * 1024
    except Exception:
        cap = 64 * 1024 * 1024  # v7x-sized fallback: safe on every generation
    budget = min(int(cap * 0.45), 48 * 1024 * 1024)     # ~48 MiB v5e/v6e, ~28 MiB v7x
    limit = min(int(cap * 0.75), budget + (16 << 20))   # headroom for compiler scratch
    return budget, limit


def _pick_tile_m(M, din, n_pad, in_bytes, out_bytes, *, max_tile=1024,
                 budget_bytes=28 * 1024 * 1024, min_grid_steps=4):
    """Largest batch tile (multiple of 16) that fits the VMEM budget while keeping enough
    grid steps for pipelining / v7x megacore sharding."""
    m16 = _round_up(max(M, 1), 16)
    tile = min(_round_up(max(max_tile, 16), 16), m16)
    if m16 >= min_grid_steps * 16:
        tile = min(tile, max(16, (m16 // min_grid_steps) // 16 * 16))
    elif m16 >= 32:
        tile = min(tile, max(16, (m16 // 2) // 16 * 16))   # at least 2 steps when possible
    # Working set: x tile (up to triple-buffered), output tile (double-buffered),
    # resident fused weights + bias.  For huge heads (din * n_pad no longer tiny) one
    # would add a second grid axis tiling n_pad instead of keeping W fully resident.
    while tile > 16:
        ws = (3 * tile * din * in_bytes
              + 2 * tile * n_pad * out_bytes
              + 2 * (din * n_pad * in_bytes + n_pad * 4))
        if ws <= budget_bytes:
            break
        tile = max(16, (tile // 2) // 16 * 16)   # re-round to a multiple of 16
    return max(tile, 16)


def _streaming_x_spec(tile_m, din, grid_len):
    idx = lambda i: (i, 0)
    if grid_len >= 3:
        try:
            # Deeper pipelining on the streaming input hides HBM latency jitter.
            return pl.BlockSpec((tile_m, din), idx, pipeline_mode=pl.Buffered(3))
        except Exception:
            pass
    return pl.BlockSpec((tile_m, din), idx)


# --------------------------------------------------------------------------------------
# pallas_call wrapper
# --------------------------------------------------------------------------------------
def _mdn_pallas(x2d, w_fused, b_fused, std_start, *, tile_m, out_dtype, vmem_limit_bytes):
    """x2d: [M, din]. w_fused: [din, n_pad], b_fused: [1, n_pad] (f32)."""
    M, din = x2d.shape
    n_pad = w_fused.shape[1]
    grid_len = pl.cdiv(M, tile_m)

    kernel = functools.partial(_mdn_fused_kernel, std_start=std_start)

    return pl.pallas_call(
        kernel,
        out_shape=jax.ShapeDtypeStruct((M, n_pad), out_dtype),
        grid_spec=pltpu.PrefetchScalarGridSpec(
            num_scalar_prefetch=0,
            grid=(grid_len,),
            in_specs=[
                _streaming_x_spec(tile_m, din, grid_len),          # streaming x tile
                pl.BlockSpec((din, n_pad), lambda i: (0, 0)),      # fused weights (resident)
                pl.BlockSpec((1, n_pad), lambda i: (0, 0)),        # fused bias, f32 (resident)
            ],
            out_specs=pl.BlockSpec((tile_m, n_pad), lambda i: (i, 0)),
        ),
        compiler_params=pltpu.CompilerParams(
            # Batch axis is fully parallel -> sharded across both TCs on v7x.
            dimension_semantics=("parallel",),
            vmem_limit_bytes=vmem_limit_bytes),
    )(x2d, w_fused, b_fused)


# --------------------------------------------------------------------------------------
# Parameter handling
# --------------------------------------------------------------------------------------
def init_mdn_params(key, dim_in, dim_out, n_components):
    """Deterministic init mimicking PyTorch nn.Linear default (uniform +-1/sqrt(in))."""
    bound = 1.0 / jnp.sqrt(jnp.float32(dim_in))
    ks = jax.random.split(key, 6)

    def lin(kw, kb, out_dim):
        # PyTorch stores W as [out, in]; kept in that convention here.
        W = jax.random.uniform(kw, (out_dim, dim_in), jnp.float32, -bound, bound)
        b = jax.random.uniform(kb, (out_dim,), jnp.float32, -bound, bound)
        return W, b

    W_pi, b_pi = lin(ks[0], ks[1], n_components)
    W_mu, b_mu = lin(ks[2], ks[3], n_components * dim_out)
    W_std, b_std = lin(ks[4], ks[5], n_components * dim_out)
    return dict(W_pi=W_pi, b_pi=b_pi, W_mu=W_mu, b_mu=b_mu, W_std=W_std, b_std=b_std)


def fuse_mdn_params(params, dim_out, n_components, *, compute_dtype=jnp.float32):
    """One-time fusion of the three heads into a single lane-aligned weight slab.

    Column layout: [ pi (K) | mu (K*D) | zero-pad to 128 boundary | std (K*D) | zero-pad ].
    The std head starts at a 128-lane boundary so the kernel applies exp() to a static,
    lane-aligned slice.  Call once and reuse (avoids re-materializing the weights per call).
    bf16 compute_dtype is recommended on all generations (v5e/v6e/v7x): only the MXU sees
    bf16, the bias add / exp / accumulation stay f32 in-kernel.
    """
    K = n_components
    KD = n_components * dim_out
    std_start = _round_up(K + KD, 128)
    n_pad = std_start + _round_up(KD, 128)

    w_lin = jnp.concatenate([params["W_pi"], params["W_mu"]], axis=0).T     # [din, K+KD]
    w_std = params["W_std"].T                                               # [din, KD]
    w = jnp.concatenate([
        jnp.pad(w_lin, ((0, 0), (0, std_start - (K + KD)))),
        jnp.pad(w_std, ((0, 0), (0, n_pad - std_start - KD))),
    ], axis=1).astype(compute_dtype)                                        # [din, n_pad]

    b = jnp.concatenate([
        jnp.pad(jnp.concatenate([params["b_pi"], params["b_mu"]]), (0, std_start - (K + KD))),
        jnp.pad(params["b_std"], (0, n_pad - std_start - KD)),
    ]).astype(jnp.float32)[None, :]                                         # [1, n_pad] f32
    return w, b


# --------------------------------------------------------------------------------------
# Forward
# --------------------------------------------------------------------------------------
def mixture_density_forward(w_fused, b_fused, x, *, dim_out, n_components,
                            out_dtype=None, max_tile_m=1024, return_fused=False):
    """x: [..., dim_in] -> (pi_logits [..., K], mean [..., K, D], std [..., K, D]).

    w_fused / b_fused come from fuse_mdn_params (prepared once).  out_dtype defaults to the
    compute dtype (bf16 weights -> bf16 outputs, halving the dominant HBM writeback).
    With return_fused=True the raw padded slab is returned so a downstream Pallas kernel
    (e.g. the MDN NLL loss) can consume the fused layout without an extra split round trip.
    """
    lead = x.shape[:-1]
    din = x.shape[-1]
    K = n_components
    KD = n_components * dim_out
    std_start = _round_up(K + KD, 128)
    n_pad = w_fused.shape[1]
    assert w_fused.shape[0] == din

    compute_dtype = w_fused.dtype
    out_dtype = compute_dtype if out_dtype is None else out_dtype

    x2d = x.reshape(-1, din).astype(compute_dtype)
    M = x2d.shape[0]

    in_bytes = jnp.dtype(compute_dtype).itemsize
    out_bytes = jnp.dtype(out_dtype).itemsize
    budget, vmem_limit = _vmem_budget()
    tile_m = _pick_tile_m(M, din, n_pad, in_bytes, out_bytes,
                          max_tile=max_tile_m, budget_bytes=budget)

    # Ragged last tile is handled by the grid (masked boundary block); no jnp.pad copy of x.
    out = _mdn_pallas(x2d, w_fused, b_fused, std_start,
                      tile_m=tile_m, out_dtype=out_dtype, vmem_limit_bytes=vmem_limit)

    if return_fused:
        return out

    pi_logits = out[:, :K].reshape(*lead, K)
    mean = out[:, K:K + KD].reshape(*lead, K, dim_out)
    std = out[:, std_start:std_start + KD].reshape(*lead, K, dim_out)
    # TODO(synk): torch.distributions wrapper objects (OneHotCategorical / Normal) have no
    # Pallas equivalent; we return their parameters (logits, loc, scale) instead.
    return pi_logits, mean, std


def _reference_forward(params, x, dim_out, n_components):
    lead = x.shape[:-1]
    pi = x @ params["W_pi"].T + params["b_pi"]
    mu = x @ params["W_mu"].T + params["b_mu"]
    std = jnp.exp(x @ params["W_std"].T + params["b_std"])
    return (pi.reshape(*lead, n_components),
            mu.reshape(*lead, n_components, dim_out),
            std.reshape(*lead, n_components, dim_out))


# --------------------------------------------------------------------------------------
if __name__ == "__main__":
    key = jax.random.PRNGKey(0)
    k_param, k_x, k_x2 = jax.random.split(key, 3)

    # Shapes implied by the module: x is [N, *, dim_in].
    N, S, dim_in = 2, 8, 32
    dim_out, n_components = 8, 4

    params = init_mdn_params(k_param, dim_in, dim_out, n_components)
    x = jax.random.normal(k_x, (N, S, dim_in), jnp.float32)
    ref_pi, ref_mu, ref_std = _reference_forward(params, x, dim_out, n_components)

    fwd = jax.jit(functools.partial(mixture_density_forward,
                                    dim_out=dim_out, n_components=n_components))

    # f32 path: tight tolerance against the plain-JAX reference.
    w32, b32 = fuse_mdn_params(params, dim_out, n_components, compute_dtype=jnp.float32)
    pi_logits, mean, std = fwd(w32, b32, x)
    jax.block_until_ready((pi_logits, mean, std))
    assert pi_logits.shape == (N, S, n_components)
    assert mean.shape == (N, S, n_components, dim_out)
    assert std.shape == (N, S, n_components, dim_out)
    assert jnp.allclose(pi_logits, ref_pi, atol=1e-4, rtol=1e-4)
    assert jnp.allclose(mean, ref_mu, atol=1e-4, rtol=1e-4)
    assert jnp.allclose(std, ref_std, atol=1e-4, rtol=1e-4)

    # Ragged batch (M not a multiple of the tile): exercises the masked boundary block.
    x_rag = jax.random.normal(k_x2, (3, 7, dim_in), jnp.float32)
    rpi, rmu, rstd = _reference_forward(params, x_rag, dim_out, n_components)
    pi_r, mu_r, std_r = fwd(w32, b32, x_rag)
    jax.block_until_ready((pi_r, mu_r, std_r))
    assert jnp.allclose(pi_r, rpi, atol=1e-4, rtol=1e-4)
    assert jnp.allclose(mu_r, rmu, atol=1e-4, rtol=1e-4)
    assert jnp.allclose(std_r, rstd, atol=1e-4, rtol=1e-4)

    # bf16 compute + bf16 store path (recommended on v5e/v6e/v7x): looser tolerance.
    wbf, bbf = fuse_mdn_params(params, dim_out, n_components, compute_dtype=jnp.bfloat16)
    pi_b, mu_b, std_b = fwd(wbf, bbf, x)
    jax.block_until_ready((pi_b, mu_b, std_b))
    assert jnp.allclose(pi_b.astype(jnp.float32), ref_pi, atol=5e-2, rtol=5e-2)
    assert jnp.allclose(mu_b.astype(jnp.float32), ref_mu, atol=5e-2, rtol=5e-2)
    assert jnp.allclose(std_b.astype(jnp.float32), ref_std, atol=5e-2, rtol=5e-2)

    print("KERNEL_OK")
</pallas_src>

<mosaic_0001>
module attributes {stable_mosaic.version = 11 : i64} {
  func.func @_mdn_fused_kernel(%arg0: i32, %arg1: memref<16x32xf32, #tpu.memory_space<vmem>>, %arg2: memref<32x256xf32, #tpu.memory_space<vmem>>, %arg3: memref<1x256xf32, #tpu.memory_space<vmem>>, %arg4: memref<16x256xf32, #tpu.memory_space<vmem>>) attributes {dimension_semantics = [#tpu.dimension_semantics<parallel>], iteration_bounds = array<i64: 1>, scalar_prefetch = 0 : i64, scratch_operands = 0 : i64, tpu.core_type = #tpu.core_type<tc>, window_params = [{transform_indices = @transform_0, window_bounds = array<i64: 16, 32>}, {pipeline_mode = #tpu.pipeline_mode<synchronous>, transform_indices = @transform_1, window_bounds = array<i64: 32, 256>}, {pipeline_mode = #tpu.pipeline_mode<synchronous>, transform_indices = @transform_2, window_bounds = array<i64: 1, 256>}, {transform_indices = @transform_3, window_bounds = array<i64: 16, 256>}]} {
    %c0 = arith.constant 0 : index
    %c0_0 = arith.constant 0 : index
    %0 = vector.load %arg1[%c0, %c0_0] : memref<16x32xf32, #tpu.memory_space<vmem>>, vector<16x32xf32>
    %c0_1 = arith.constant 0 : index
    %c0_2 = arith.constant 0 : index
    %1 = vector.load %arg2[%c0_1, %c0_2] : memref<32x256xf32, #tpu.memory_space<vmem>>, vector<32x256xf32>
    %cst = arith.constant dense<0.000000e+00> : vector<16x256xf32>
    %2 = tpu.matmul %0, %1, %cst {dimension_numbers = #tpu.dot_dimension_numbers<[1], [0], [0], [1], [0, 0, 1, 1], [], []>} : vector<16x32xf32>, vector<32x256xf32>, vector<16x256xf32> -> vector<16x256xf32>
    %c0_3 = arith.constant 0 : index
    %c0_4 = arith.constant 0 : index
    %3 = vector.load %arg3[%c0_3, %c0_4] : memref<1x256xf32, #tpu.memory_space<vmem>>, vector<1x256xf32>
    %4 = vector.broadcast %3 : vector<1x256xf32> to vector<16x256xf32>
    %5 = arith.addf %2, %4 : vector<16x256xf32>
    %6 = vector.extract_strided_slice %5 {offsets = [0, 0], sizes = [16, 128], strides = [1, 1]} : vector<16x256xf32> to vector<16x128xf32>
    %c0_5 = arith.constant 0 : index
    %c0_6 = arith.constant 0 : index
    %7 = vector.load %arg4[%c0_5, %c0_6] : memref<16x256xf32, #tpu.memory_space<vmem>>, vector<16x128xf32>
    tpu.vector_store %arg4[%c0_5, %c0_6], %6 {strides = array<i32>} : memref<16x256xf32, #tpu.memory_space<vmem>>, vector<16x128xf32>,
    %8 = vector.extract_strided_slice %5 {offsets = [0, 128], sizes = [16, 128], strides = [1, 1]} : vector<16x256xf32> to vector<16x128xf32>
    %9 = math.exp %8 : vector<16x128xf32>
    %c0_7 = arith.constant 0 : index
    %c128 = arith.constant 128 : index
    %10 = vector.load %arg4[%c0_7, %c128] : memref<16x256xf32, #tpu.memory_space<vmem>>, vector<16x128xf32>
    tpu.vector_store %arg4[%c0_7, %c128], %9 {strides = array<i32>} : memref<16x256xf32, #tpu.memory_space<vmem>>, vector<16x128xf32>,
    return
  }
  func.func @transform_0(%arg0: i32) -> (i32, i32) {
    %c0_i32 = arith.constant 0 : i32
    %c0_i32_0 = arith.constant 0 : i32
    return %arg0, %c0_i32 : i32, i32
  }
  func.func @transform_1(%arg0: i32) -> (i32, i32) {
    %c0_i32 = arith.constant 0 : i32
    %c0_i32_0 = arith.constant 0 : i32
    %c0_i32_1 = arith.constant 0 : i32
    return %c0_i32, %c0_i32_0 : i32, i32
  }
  func.func @transform_2(%arg0: i32) -> (i32, i32) {
    %c0_i32 = arith.constant 0 : i32
    %c0_i32_0 = arith.constant 0 : i32
    %c0_i32_1 = arith.constant 0 : i32
    return %c0_i32, %c0_i32_0 : i32, i32
  }
  func.func @transform_3(%arg0: i32) -> (i32, i32) {
    %c0_i32 = arith.constant 0 : i32
    %c0_i32_0 = arith.constant 0 : i32
    return %arg0, %c0_i32 : i32, i32
  }
}

</mosaic_0001>

<llo_original>
// kernel: mixture_density_forward.1
$region0: #{mixture_density_forward.1}
  #allocation0 [shape = 'u32[]', space=smem, size = 0x4, offset = 0x4, fixed_abs, tag = 'smem constant byte address 0x4 - core index']
  #allocation1 [shape = 'u32[72,128]{1,0:T(1,128)}', space=vmem, size = 0x9000, scoped, tag = 'internal scratch']
  %s0 = inlined_call_operand.hbm [shape: f32[16,32], index: 0, kind: input, shape index: {}]
  %s1 = inlined_call_operand.hbm [shape: f32[32,256], index: 1, kind: input, shape index: {}]
  %s2 = inlined_call_operand.hbm [shape: f32[1,256], index: 2, kind: input, shape index: {}]
  %s3 = inlined_call_operand.vmem [shape: f32[16,256], index: 3, kind: output, shape index: {}]
  %s4 = sld [smem:[#allocation0]]
  $region34: #{mixture_density_forward.1} parent=0
    _
  %s6 = ssub.s32 1, %s4
  %s7 = scalar_select 0, %s6, %s4
  $region1: #{mixture_density_forward.1} parent=0
    #allocation2 [shape = 'u8[8192]{0}', space=vmem, size = 0x2000, scoped, tag = 'input window, operand 0, single buffered']
    #allocation3 [shape = 's32[1]{0}', space=sflag, size = 0x4, scoped, tag = 'scoped memory for mixture_density_forward.1']
    #allocation4 [shape = 'u8[32768]{0}', space=vmem, size = 0x8000, scoped, tag = 'input window, operand 1, single buffered']
    #allocation5 [shape = 's32[1]{0}', space=sflag, size = 0x4, scoped, tag = 'scoped memory for mixture_density_forward.1']
    #allocation6 [shape = 'u8[1024]{0}', space=vmem, size = 0x400, scoped, tag = 'input window, operand 2, single buffered']
    %8 = vsyncpa [#allocation3], 0
    %9 = vsyncpa [#allocation5], 0
    // Predicated region
    $region2: #{mixture_density_forward.1} parent=1 // pred_check
      _
    $region3: #{mixture_density_forward.1} parent=1 // pred_check_branch
      %11 = sbr.rel (0) target = $region5
    $region4: #{mixture_density_forward.1} parent=1 // pred_region
      %13 = vsyncadd [#allocation3], 0
      %s14 = sshll.u32 %s0, 4
      %s15 = int_to_ptr.hbm [resolvable:$true] %s14
      %s16 = sshll.u32 [#allocation2], 4
      %s17 = int_to_ptr.vmem [resolvable:$true] %s16
      %22 = dma.hbm_to_vmem [thread:$0]  %s15, 256, %s17, [#allocation3], 128, 128, 8
    $region5: #{mixture_density_forward.1} parent=1 // pred_fallthru
      _
    // Predicated region
    $region6: #{mixture_density_forward.1} parent=1 // pred_check
      _
    $region7: #{mixture_density_forward.1} parent=1 // pred_check_branch
      %24 = sbr.rel (0) target = $region9
    $region8: #{mixture_density_forward.1} parent=1 // pred_region
      %26 = vsyncadd [#allocation5], 0
      %s27 = sshll.u32 %s1, 4
      %s28 = int_to_ptr.hbm [resolvable:$true] %s27
      %s29 = sshll.u32 [#allocation4], 4
      %s30 = int_to_ptr.vmem [resolvable:$true] %s29
      %35 = dma.hbm_to_vmem [thread:$0]  %s28, 1024, %s30, [#allocation5], 256, 256, 16
    $region9: #{mixture_density_forward.1} parent=1 // pred_fallthru
      _
    // Predicated region
    $region10: #{mixture_density_forward.1} parent=1 // pred_check
      _
    $region11: #{mixture_density_forward.1} parent=1 // pred_check_branch
      %37 = sbr.rel (0) target = $region13
    $region12: #{mixture_density_forward.1} parent=1 // pred_region
      %39 = vsyncadd [#allocation5], 0
      %s41 = sshll.u32 %s2, 4
      %s42 = int_to_ptr.hbm [resolvable:$true] %s41
      %s43 = sshll.u32 [#allocation6], 4
      %s44 = int_to_ptr.vmem [resolvable:$true] %s43
      %46 = dma.hbm_to_vmem [thread:$0]  %s42, 32, %s44, [#allocation5]
    $region13: #{mixture_density_forward.1} parent=1 // pred_fallthru
      _
    // Predicated region
    $region14: #{mixture_density_forward.1} parent=1 // pred_check
      _
    $region15: #{mixture_density_forward.1} parent=1 // pred_check_branch
      %48 = sbr.rel (0) target = $region17
    $region16: #{mixture_density_forward.1} parent=1 // pred_region
      %50 = dma.done [#allocation3], 256
    $region17: #{mixture_density_forward.1} parent=1 // pred_fallthru
      _
    // Predicated region
    $region18: #{mixture_density_forward.1} parent=1 // pred_check
      _
    $region19: #{mixture_density_forward.1} parent=1 // pred_check_branch
      %52 = sbr.rel (0) target = $region21
    $region20: #{mixture_density_forward.1} parent=1 // pred_region
      %54 = dma.done [#allocation5], 1024
    $region21: #{mixture_density_forward.1} parent=1 // pred_fallthru
      _
    // Predicated region
    $region22: #{mixture_density_forward.1} parent=1 // pred_check
      _
    $region23: #{mixture_density_forward.1} parent=1 // pred_check_branch
      %56 = sbr.rel (0) target = $region25
    $region24: #{mixture_density_forward.1} parent=1 // pred_region
      %58 = dma.done [#allocation5], 32
    $region25: #{mixture_density_forward.1} parent=1 // pred_fallthru
      _
    %v59 = vld [vmem:[#allocation2] sm:$0xff]
    %v60 = vld [vmem:[#allocation2 + $0x8] sm:$0xff]
    %v61 = vld [vmem:[#allocation4] sm:$0xff]
    %v62 = vld [vmem:[#allocation4 + $0x8] sm:$0xff]
    %v63 = vld [vmem:[#allocation4 + $0x10] sm:$0xff]
    %v64 = vld [vmem:[#allocation4 + $0x18] sm:$0xff]
    %v65 = vld [vmem:[#allocation4 + $0x20] sm:$0xff]
    %v66 = vld [vmem:[#allocation4 + $0x28] sm:$0xff]
    %v67 = vld [vmem:[#allocation4 + $0x30] sm:$0xff]
    %v68 = vld [vmem:[#allocation4 + $0x38] sm:$0xff]
    %v69 = vld [vmem:[#allocation6] sm:$0x3]
    %v71 = vperm.slane %v69, 0
    %v72 = vperm.slane %v69, 1
    %vm75 = vcmask 261120
    %v77 = vsel %vm75, %v59, 0
    %v80 = vsel %vm75, %v60, 0
    %82 = vmatpush.msra.mxu0 0.0
    %83 = vmatpush.msra.mxu0 0.0
    %84 = vmatpush.msra.mxu0 0.0
    %85 = vmatpush.msra.mxu0 0.0
    %86 = vmatpush.msra.mxu0 0.0
    %87 = vmatpush.msra.mxu0 0.0
    %88 = vmatpush.msra.mxu0 0.0
    %89 = vmatpush.msra.mxu0 0.0
    %90 = vmatpush.msra.mxu0 0.0
    %91 = vmatpush.msra.mxu0 0.0
    %92 = vmatpush.msra.mxu0 0.0
    %93 = vmatpush.msra.mxu0 0.0
    %94 = vmatpush.msra.mxu0 %v67
    %95 = vmatpush.msra.mxu0 %v65
    %96 = vmatpush.msra.mxu0 %v63
    %97 = vmatpush.msra.mxu0 %v61
    %98 = vmatmul.f32.gmra.mxu0 %v77
    %v99 = vpop.f32.mrf.mxu0
    %v100 = vadd.f32 %v71, %v99
    %101 = vmatmul.f32.gmra.mxu0 %v80
    %v102 = vpop.f32.mrf.mxu0
    %v103 = vadd.f32 %v71, %v102
    %104 = vdwg.mxu0
    %105 = vmatpush.msra.mxu0 0.0
    %106 = vmatpush.msra.mxu0 0.0
    %107 = vmatpush.msra.mxu0 0.0
    %108 = vmatpush.msra.mxu0 0.0
    %109 = vmatpush.msra.mxu0 0.0
    %110 = vmatpush.msra.mxu0 0.0
    %111 = vmatpush.msra.mxu0 0.0
    %112 = vmatpush.msra.mxu0 0.0
    %113 = vmatpush.msra.mxu0 0.0
    %114 = vmatpush.msra.mxu0 0.0
    %115 = vmatpush.msra.mxu0 0.0
    %116 = vmatpush.msra.mxu0 0.0
    %117 = vmatpush.msra.mxu0 %v68
    %118 = vmatpush.msra.mxu0 %v66
    %119 = vmatpush.msra.mxu0 %v64
    %120 = vmatpush.msra.mxu0 %v62
    %121 = vmatmul.f32.gmra.mxu0 %v77
    %v122 = vpop.f32.mrf.mxu0
    %v123 = vadd.f32 %v72, %v122
    %124 = vmatmul.f32.gmra.mxu0 %v80
    %v125 = vpop.f32.mrf.mxu0
    %v126 = vadd.f32 %v72, %v125
    %127 = vdwg.mxu0
    %128 = vst [vmem:[%s3] sm:$0xff] %v100
    %129 = vst [vmem:[%s3 + $0x10] sm:$0xff] %v103
    %v130 = vmul.f32 %v123, 1.442695
    %v131 = vpow.pop %v130
    %v132 = vmul.f32 %v126, 1.442695
    %v133 = vpow.pop %v132
    %134 = vst [vmem:[%s3 + $0x8] sm:$0xff] %v131
    %135 = vst [vmem:[%s3 + $0x18] sm:$0xff] %v133
    // Predicated region
    $region26: #{mixture_density_forward.1} parent=1 // pred_check
      _
    $region27: #{mixture_density_forward.1} parent=1 // pred_check_branch
      %137 = sbr.rel (0) target = $region29
    $region28: #{mixture_density_forward.1} parent=1 // pred_region
      _
    $region29: #{mixture_density_forward.1} parent=1 // pred_fallthru
      _
    // Predicated region
    $region30: #{mixture_density_forward.1} parent=1 // pred_check
      _
    $region31: #{mixture_density_forward.1} parent=1 // pred_check_branch
      %139 = sbr.rel (0) target = $region33
    $region32: #{mixture_density_forward.1} parent=1 // pred_region
      _
    $region33: #{mixture_density_forward.1} parent=1 // pred_fallthru
      _
    %140 = vsyncpa [#allocation3], 1
    %141 = vsyncpa [#allocation5], 1

</llo_original>
